<compile_context>
chip_gen: v6e
topology: v6e:2x2x1
jax: 0.10.0
libtpu: 0.0.40
codegen_flags: <defaults>
</compile_context>

<pallas_src>
from functools import partial

import jax
import jax.numpy as jnp
from jax.experimental import pallas as pl
from jax.experimental.pallas import tpu as pltpu

LANE = 128
SUBLANE_BF16 = 16


def _round_up(x, m):
    return ((x + m - 1) // m) * m


def _pick_row_tile(hw, max_tile):
    """Largest divisor of hw that is <= max_tile and a multiple of 8."""
    if hw <= max_tile:
        return hw
    for cand in range(max_tile, 7, -1):
        if hw % cand == 0 and cand % 8 == 0:
            return cand
    return hw  # fallback: full spatial extent (always a legal block dim)


def _groupdro_kernel(patches_ref, wcol_ref, bconv_ref, whead_ref, bhead_ref,
                     logits_ref, feats_ref, *, inv_hw):
    t = pl.program_id(1)

    # init resident output accumulators on the first reduction step
    @pl.when(t == 0)
    def _():
        feats_ref[...] = jnp.zeros_like(feats_ref)
        logits_ref[...] = jnp.zeros_like(logits_ref)

    # conv as im2col matmul on the MXU: bf16 inputs, f32 accumulation
    conv = jnp.dot(patches_ref[...], wcol_ref[...],
                   preferred_element_type=jnp.float32)        # (TILE, COUT_P)
    conv = jnp.maximum(conv + bconv_ref[...], 0.0)            # bias + ReLU

    # running global-average-pool sum, resident in the output block across t
    feats_ref[...] += jnp.sum(conv, axis=0, keepdims=True)    # (1, COUT_P)

    # finalize on the last tile: normalize pool + tiny classifier head
    @pl.when(t == pl.num_programs(1) - 1)
    def _():
        feats = feats_ref[...] * inv_hw                       # (1, COUT_P)
        feats_ref[...] = feats
        logits_ref[...] = (jnp.dot(feats, whead_ref[...],
                                   preferred_element_type=jnp.float32)
                           + bhead_ref[...])                  # (1, NC_P)


def group_dro_forward(x_nchw, params, return_features=False,
                      max_rows_per_tile=2048):
    """Forward pass of GroupDROModel (image-modality base model)."""
    w_conv = params["w_conv"]   # (Cout, Cin, K, K)  -- PyTorch conv layout
    b_conv = params["b_conv"]   # (Cout,)
    w_head = params["w_head"]   # (Cout, num_classes)
    b_head = params["b_head"]   # (num_classes,)

    B, Cin, H, W = x_nchw.shape
    Cout, _, K, _ = w_conv.shape
    NC = w_head.shape[1]
    HW = H * W
    KKC = K * K * Cin
    # contraction dim padded only to the bf16 sublane pack (16), not 128:
    # cuts the im2col HBM stream ~2.7x vs a full-lane pad for K=3, Cin=4.
    KP = _round_up(KKC, SUBLANE_BF16)
    COUT_P = _round_up(Cout, LANE)   # padded feature dim (lane-dense stores)
    NC_P = _round_up(NC, LANE)       # padded logits dim  (lane-dense stores)

    # ---- plain-JAX glue: NCHW -> NHWC, SAME pad, im2col -------------------
    # TODO(synk): for large images, replace wrapper-side im2col (~K*K x HBM
    # inflation) with in-kernel shifted-slice matmuls over manually DMA'd
    # NHWC row tiles (memory_space=pl.ANY + halo copies).
    x = jnp.transpose(x_nchw, (0, 2, 3, 1)).astype(jnp.float32)   # NHWC
    pad = K // 2
    xp = jnp.pad(x, ((0, 0), (pad, pad), (pad, pad), (0, 0)))
    patches = jnp.stack([xp[:, kh:kh + H, kw:kw + W, :]
                         for kh in range(K) for kw in range(K)], axis=3)
    patches = patches.reshape(B, HW, KKC)
    patches = jnp.pad(patches,
                      ((0, 0), (0, 0), (0, KP - KKC))).astype(jnp.bfloat16)

    # (Cout, Cin, K, K) -> (K*K*Cin, Cout), zero-padded + bf16
    w_col = jnp.transpose(w_conv, (2, 3, 1, 0)).reshape(KKC, Cout)
    w_col = jnp.pad(w_col,
                    ((0, KP - KKC), (0, COUT_P - Cout))).astype(jnp.bfloat16)
    b_conv_p = jnp.pad(b_conv.reshape(1, Cout).astype(jnp.float32),
                       ((0, 0), (0, COUT_P - Cout)))
    w_head_p = jnp.pad(w_head.astype(jnp.float32),
                       ((0, COUT_P - Cout), (0, NC_P - NC)))
    b_head_p = jnp.pad(b_head.reshape(1, NC).astype(jnp.float32),
                       ((0, 0), (0, NC_P - NC)))

    # ---- tiling / compiler params -----------------------------------------
    tile = _pick_row_tile(HW, max_rows_per_tile)
    n_t = HW // tile

    cost = pl.CostEstimate(
        flops=2 * B * HW * KP * COUT_P + 2 * B * COUT_P * NC_P,
        transcendentals=0,
        bytes_accessed=int(patches.size * 2 + w_col.size * 2
                           + (b_conv_p.size + w_head_p.size + b_head_p.size) * 4
                           + B * (COUT_P + NC_P) * 4))

    vmem_needed = (2 * tile * KP * 2            # double-buffered patch tiles
                   + KP * COUT_P * 2            # w_col (resident)
                   + tile * COUT_P * 4          # f32 conv activation tile
                   + (COUT_P * NC_P + 2 * COUT_P + 2 * NC_P) * 4)
    vmem_limit = int(min(max(4 * vmem_needed, 16 << 20), 48 << 20))

    # ---- Pallas hot path ---------------------------------------------------
    kernel = partial(_groupdro_kernel, inv_hw=1.0 / HW)
    logits_p, feats_p = pl.pallas_call(
        kernel,
        grid=(B, n_t),
        in_specs=[
            pl.BlockSpec((None, tile, KP), lambda b, t: (b, t, 0)),   # patches
            pl.BlockSpec((KP, COUT_P), lambda b, t: (0, 0)),          # w_col
            pl.BlockSpec((1, COUT_P), lambda b, t: (0, 0)),           # b_conv
            pl.BlockSpec((COUT_P, NC_P), lambda b, t: (0, 0)),        # w_head
            pl.BlockSpec((1, NC_P), lambda b, t: (0, 0)),             # b_head
        ],
        out_specs=(
            pl.BlockSpec((None, 1, NC_P), lambda b, t: (b, 0, 0)),    # logits
            pl.BlockSpec((None, 1, COUT_P), lambda b, t: (b, 0, 0)),  # feats
        ),
        out_shape=(jax.ShapeDtypeStruct((B, 1, NC_P), jnp.float32),
                   jax.ShapeDtypeStruct((B, 1, COUT_P), jnp.float32)),
        compiler_params=pltpu.CompilerParams(
            dimension_semantics=("parallel", "arbitrary"),
            vmem_limit_bytes=vmem_limit),
        cost_estimate=cost,
    )(patches, w_col, b_conv_p, w_head_p, b_head_p)

    logits = logits_p[:, 0, :NC]
    feats = feats_p[:, 0, :Cout]
    if return_features:
        return logits, feats
    return logits


def _reference_forward(x_nchw, params):
    """Plain-JAX reference of the same base model (for a sanity check)."""
    x = jnp.transpose(x_nchw, (0, 2, 3, 1)).astype(jnp.float32)
    w_hwio = jnp.transpose(params["w_conv"], (2, 3, 1, 0))
    conv = jax.lax.conv_general_dilated(
        x, w_hwio, window_strides=(1, 1), padding="SAME",
        dimension_numbers=("NHWC", "HWIO", "NHWC"))
    conv = jax.nn.relu(conv + params["b_conv"])
    feats = conv.mean(axis=(1, 2))
    logits = feats @ params["w_head"] + params["b_head"]
    return logits, feats


if __name__ == "__main__":
    # small shapes consistent with an image-modality forward pass
    B, Cin, H, W = 2, 4, 16, 16
    Cout, K, NC = 32, 3, 2

    key = jax.random.PRNGKey(0)
    k_x, k_wc, k_bc, k_wh, k_bh = jax.random.split(key, 5)

    x = jax.random.normal(k_x, (B, Cin, H, W), dtype=jnp.float32)
    params = {
        "w_conv": 0.1 * jax.random.normal(k_wc, (Cout, Cin, K, K), jnp.float32),
        "b_conv": 0.1 * jax.random.normal(k_bc, (Cout,), jnp.float32),
        "w_head": 0.1 * jax.random.normal(k_wh, (Cout, NC), jnp.float32),
        "b_head": 0.1 * jax.random.normal(k_bh, (NC,), jnp.float32),
    }

    # max_rows_per_tile=128 -> 2 reduction steps over HW=256 (exercises the
    # tiled accumulation path); default 2048 for bigger images.
    logits, feats = group_dro_forward(x, params, return_features=True,
                                      max_rows_per_tile=128)
    jax.block_until_ready((logits, feats))

    # also exercise the logits-only forward path (single reduction step)
    logits_only = group_dro_forward(x, params)
    jax.block_until_ready(logits_only)

    ref_logits, ref_feats = _reference_forward(x, params)
    assert logits.shape == (B, NC) and feats.shape == (B, Cout)
    assert logits_only.shape == (B, NC)
    assert jnp.allclose(logits, ref_logits, rtol=5e-2, atol=5e-2)
    assert jnp.allclose(feats, ref_feats, rtol=5e-2, atol=5e-2)
    assert jnp.allclose(logits_only, ref_logits, rtol=5e-2, atol=5e-2)

    print("KERNEL_OK")
</pallas_src>

<mosaic_0001>
module attributes {stable_mosaic.version = 11 : i64} {
  func.func @_groupdro_kernel(%arg0: i32, %arg1: i32, %arg2: memref<1x128x48xbf16, #tpu.memory_space<vmem>>, %arg3: memref<48x128xbf16, #tpu.memory_space<vmem>>, %arg4: memref<1x128xf32, #tpu.memory_space<vmem>>, %arg5: memref<128x128xf32, #tpu.memory_space<vmem>>, %arg6: memref<1x128xf32, #tpu.memory_space<vmem>>, %arg7: memref<1x1x128xf32, #tpu.memory_space<vmem>>, %arg8: memref<1x1x128xf32, #tpu.memory_space<vmem>>) attributes {dimension_semantics = [#tpu.dimension_semantics<parallel>, #tpu.dimension_semantics<arbitrary>], iteration_bounds = array<i64: 2, 2>, scalar_prefetch = 0 : i64, scratch_operands = 0 : i64, tpu.core_type = #tpu.core_type<tc>, window_params = [{transform_indices = @transform_0, window_bounds = array<i64: 1, 128, 48>}, {pipeline_mode = #tpu.pipeline_mode<synchronous>, transform_indices = @transform_1, window_bounds = array<i64: 48, 128>}, {pipeline_mode = #tpu.pipeline_mode<synchronous>, transform_indices = @transform_2, window_bounds = array<i64: 1, 128>}, {pipeline_mode = #tpu.pipeline_mode<synchronous>, transform_indices = @transform_3, window_bounds = array<i64: 128, 128>}, {pipeline_mode = #tpu.pipeline_mode<synchronous>, transform_indices = @transform_4, window_bounds = array<i64: 1, 128>}, {transform_indices = @transform_5, window_bounds = array<i64: 1, 1, 128>}, {transform_indices = @transform_6, window_bounds = array<i64: 1, 1, 128>}]} {
    %c0_i32 = arith.constant 0 : i32
    %0 = arith.cmpi eq, %arg1, %c0_i32 : i32
    %1 = arith.extui %0 : i1 to i32
    %c0_i32_0 = arith.constant 0 : i32
    %2 = arith.cmpi ne, %1, %c0_i32_0 : i32
    scf.if %2 {
      %cst_16 = arith.constant 0.000000e+00 : f32
      %23 = vector.broadcast %cst_16 : f32 to vector<1x128xf32>
      %c0_17 = arith.constant 0 : index
      %c0_18 = arith.constant 0 : index
      %c0_19 = arith.constant 0 : index
      %24 = vector.load %arg8[%c0_17, %c0_18, %c0_19] : memref<1x1x128xf32, #tpu.memory_space<vmem>>, vector<1x1x128xf32>
      %25 = vector.shape_cast %24 : vector<1x1x128xf32> to vector<1x128xf32>
      %26 = vector.shape_cast %23 : vector<1x128xf32> to vector<1x1x128xf32>
      tpu.vector_store %arg8[%c0_17, %c0_18, %c0_19], %26 {strides = array<i32>} : memref<1x1x128xf32, #tpu.memory_space<vmem>>, vector<1x1x128xf32>,
      %cst_20 = arith.constant 0.000000e+00 : f32
      %27 = vector.broadcast %cst_20 : f32 to vector<1x128xf32>
      %c0_21 = arith.constant 0 : index
      %c0_22 = arith.constant 0 : index
      %c0_23 = arith.constant 0 : index
      %28 = vector.load %arg7[%c0_21, %c0_22, %c0_23] : memref<1x1x128xf32, #tpu.memory_space<vmem>>, vector<1x1x128xf32>
      %29 = vector.shape_cast %28 : vector<1x1x128xf32> to vector<1x128xf32>
      %30 = vector.shape_cast %27 : vector<1x128xf32> to vector<1x1x128xf32>
      tpu.vector_store %arg7[%c0_21, %c0_22, %c0_23], %30 {strides = array<i32>} : memref<1x1x128xf32, #tpu.memory_space<vmem>>, vector<1x1x128xf32>,
    } else {
    }
    %c0 = arith.constant 0 : index
    %c0_1 = arith.constant 0 : index
    %c0_2 = arith.constant 0 : index
    %3 = vector.load %arg2[%c0, %c0_1, %c0_2] : memref<1x128x48xbf16, #tpu.memory_space<vmem>>, vector<1x128x48xbf16>
    %4 = vector.shape_cast %3 : vector<1x128x48xbf16> to vector<128x48xbf16>
    %c0_3 = arith.constant 0 : index
    %c0_4 = arith.constant 0 : index
    %5 = vector.load %arg3[%c0_3, %c0_4] : memref<48x128xbf16, #tpu.memory_space<vmem>>, vector<48x128xbf16>
    %cst = arith.constant dense<0.000000e+00> : vector<128x128xf32>
    %6 = tpu.matmul %4, %5, %cst {dimension_numbers = #tpu.dot_dimension_numbers<[1], [0], [0], [1], [0, 0, 1, 1], [], []>} : vector<128x48xbf16>, vector<48x128xbf16>, vector<128x128xf32> -> vector<128x128xf32>
    %c0_5 = arith.constant 0 : index
    %c0_6 = arith.constant 0 : index
    %7 = vector.load %arg4[%c0_5, %c0_6] : memref<1x128xf32, #tpu.memory_space<vmem>>, vector<1x128xf32>
    %8 = vector.broadcast %7 : vector<1x128xf32> to vector<128x128xf32>
    %9 = arith.addf %6, %8 : vector<128x128xf32>
    %cst_7 = arith.constant 0.000000e+00 : f32
    %10 = vector.broadcast %cst_7 : f32 to vector<128x128xf32>
    %11 = arith.maximumf %9, %10 : vector<128x128xf32>
    %c0_8 = arith.constant 0 : index
    %c0_9 = arith.constant 0 : index
    %c0_10 = arith.constant 0 : index
    %12 = vector.load %arg8[%c0_8, %c0_9, %c0_10] : memref<1x1x128xf32, #tpu.memory_space<vmem>>, vector<1x1x128xf32>
    %13 = vector.shape_cast %12 : vector<1x1x128xf32> to vector<1x128xf32>
    %cst_11 = arith.constant dense<0.000000e+00> : vector<128xf32>
    %14 = vector.multi_reduction <add>, %11, %cst_11 [0] : vector<128x128xf32> to vector<128xf32>
    %15 = vector.shape_cast %14 : vector<128xf32> to vector<1x128xf32>
    %16 = arith.addf %13, %15 : vector<1x128xf32>
    %c0_12 = arith.constant 0 : index
    %c0_13 = arith.constant 0 : index
    %c0_14 = arith.constant 0 : index
    %17 = vector.load %arg8[%c0_12, %c0_13, %c0_14] : memref<1x1x128xf32, #tpu.memory_space<vmem>>, vector<1x1x128xf32>
    %18 = vector.shape_cast %17 : vector<1x1x128xf32> to vector<1x128xf32>
    %19 = vector.shape_cast %16 : vector<1x128xf32> to vector<1x1x128xf32>
    tpu.vector_store %arg8[%c0_12, %c0_13, %c0_14], %19 {strides = array<i32>} : memref<1x1x128xf32, #tpu.memory_space<vmem>>, vector<1x1x128xf32>,
    %c1_i32 = arith.constant 1 : i32
    %20 = arith.cmpi eq, %arg1, %c1_i32 : i32
    %21 = arith.extui %20 : i1 to i32
    %c0_i32_15 = arith.constant 0 : i32
    %22 = arith.cmpi ne, %21, %c0_i32_15 : i32
    scf.if %22 {
      %c0_16 = arith.constant 0 : index
      %c0_17 = arith.constant 0 : index
      %c0_18 = arith.constant 0 : index
      %23 = vector.load %arg8[%c0_16, %c0_17, %c0_18] : memref<1x1x128xf32, #tpu.memory_space<vmem>>, vector<1x1x128xf32>
      %24 = vector.shape_cast %23 : vector<1x1x128xf32> to vector<1x128xf32>
      %cst_19 = arith.constant 3.906250e-03 : f32
      %25 = vector.broadcast %cst_19 : f32 to vector<1x128xf32>
      %26 = arith.mulf %24, %25 : vector<1x128xf32>
      %c0_20 = arith.constant 0 : index
      %c0_21 = arith.constant 0 : index
      %c0_22 = arith.constant 0 : index
      %27 = vector.load %arg8[%c0_20, %c0_21, %c0_22] : memref<1x1x128xf32, #tpu.memory_space<vmem>>, vector<1x1x128xf32>
      %28 = vector.shape_cast %27 : vector<1x1x128xf32> to vector<1x128xf32>
      %29 = vector.shape_cast %26 : vector<1x128xf32> to vector<1x1x128xf32>
      tpu.vector_store %arg8[%c0_20, %c0_21, %c0_22], %29 {strides = array<i32>} : memref<1x1x128xf32, #tpu.memory_space<vmem>>, vector<1x1x128xf32>,
      %c0_23 = arith.constant 0 : index
      %c0_24 = arith.constant 0 : index
      %30 = vector.load %arg5[%c0_23, %c0_24] : memref<128x128xf32, #tpu.memory_space<vmem>>, vector<128x128xf32>
      %cst_25 = arith.constant dense<0.000000e+00> : vector<1x128xf32>
      %31 = tpu.matmul %26, %30, %cst_25 {dimension_numbers = #tpu.dot_dimension_numbers<[1], [0], [0], [1], [0, 0, 1, 1], [], []>} : vector<1x128xf32>, vector<128x128xf32>, vector<1x128xf32> -> vector<1x128xf32>
      %c0_26 = arith.constant 0 : index
      %c0_27 = arith.constant 0 : index
      %32 = vector.load %arg6[%c0_26, %c0_27] : memref<1x128xf32, #tpu.memory_space<vmem>>, vector<1x128xf32>
      %33 = arith.addf %31, %32 : vector<1x128xf32>
      %c0_28 = arith.constant 0 : index
      %c0_29 = arith.constant 0 : index
      %c0_30 = arith.constant 0 : index
      %34 = vector.load %arg7[%c0_28, %c0_29, %c0_30] : memref<1x1x128xf32, #tpu.memory_space<vmem>>, vector<1x1x128xf32>
      %35 = vector.shape_cast %34 : vector<1x1x128xf32> to vector<1x128xf32>
      %36 = vector.shape_cast %33 : vector<1x128xf32> to vector<1x1x128xf32>
      tpu.vector_store %arg7[%c0_28, %c0_29, %c0_30], %36 {strides = array<i32>} : memref<1x1x128xf32, #tpu.memory_space<vmem>>, vector<1x1x128xf32>,
    } else {
    }
    return
  }
  func.func @transform_0(%arg0: i32, %arg1: i32) -> (i32, i32, i32) {
    %c0_i32 = arith.constant 0 : i32
    %c0_i32_0 = arith.constant 0 : i32
    return %arg0, %arg1, %c0_i32 : i32, i32, i32
  }
  func.func @transform_1(%arg0: i32, %arg1: i32) -> (i32, i32) {
    %c0_i32 = arith.constant 0 : i32
    %c0_i32_0 = arith.constant 0 : i32
    %c0_i32_1 = arith.constant 0 : i32
    return %c0_i32, %c0_i32_0 : i32, i32
  }
  func.func @transform_2(%arg0: i32, %arg1: i32) -> (i32, i32) {
    %c0_i32 = arith.constant 0 : i32
    %c0_i32_0 = arith.constant 0 : i32
    %c0_i32_1 = arith.constant 0 : i32
    return %c0_i32, %c0_i32_0 : i32, i32
  }
  func.func @transform_3(%arg0: i32, %arg1: i32) -> (i32, i32) {
    %c0_i32 = arith.constant 0 : i32
    %c0_i32_0 = arith.constant 0 : i32
    %c0_i32_1 = arith.constant 0 : i32
    return %c0_i32, %c0_i32_0 : i32, i32
  }
  func.func @transform_4(%arg0: i32, %arg1: i32) -> (i32, i32) {
    %c0_i32 = arith.constant 0 : i32
    %c0_i32_0 = arith.constant 0 : i32
    %c0_i32_1 = arith.constant 0 : i32
    return %c0_i32, %c0_i32_0 : i32, i32
  }
  func.func @transform_5(%arg0: i32, %arg1: i32) -> (i32, i32, i32) {
    %c0_i32 = arith.constant 0 : i32
    %c0_i32_0 = arith.constant 0 : i32
    %c0_i32_1 = arith.constant 0 : i32
    return %arg0, %c0_i32, %c0_i32_0 : i32, i32, i32
  }
  func.func @transform_6(%arg0: i32, %arg1: i32) -> (i32, i32, i32) {
    %c0_i32 = arith.constant 0 : i32
    %c0_i32_0 = arith.constant 0 : i32
    %c0_i32_1 = arith.constant 0 : i32
    return %arg0, %c0_i32, %c0_i32_0 : i32, i32, i32
  }
}

</mosaic_0001>

<llo_original>
// kernel: tpu_custom_call.1
$region0: #{tpu_custom_call.1}
  #allocation0 [shape = 'u32[]', space=smem, size = 0x4, offset = 0x4, fixed_abs, tag = 'smem constant byte address 0x4 - core index']
  #allocation1 [shape = 'u32[144,128]{1,0:T(1,128)}', space=vmem, size = 0x12000, scoped, tag = 'internal scratch']
  %s0 = inlined_call_operand.vmem [shape: bf16[2,256,48], index: 0, kind: input, shape index: {}]
  %s1 = inlined_call_operand.vmem [shape: bf16[48,128], index: 1, kind: input, shape index: {}]
  %s2 = inlined_call_operand.vmem [shape: f32[1,128], index: 2, kind: input, shape index: {}]
  %s3 = inlined_call_operand.vmem [shape: f32[128,128], index: 3, kind: input, shape index: {}]
  %s4 = inlined_call_operand.vmem [shape: f32[1,128], index: 4, kind: input, shape index: {}]
  %s5 = inlined_call_operand.hbm [shape: f32[2,1,128], index: 5, kind: output, shape index: {0}]
  %s6 = inlined_call_operand.hbm [shape: f32[2,1,128], index: 6, kind: output, shape index: {1}]
  %7 = xla_tuple %s5, %s6
  %s8 = sld [smem:[#allocation0]]
  $region69: #{tpu_custom_call.1} parent=0
    _
  %s10 = ssub.s32 1, %s8
  %s11 = scalar_select 0, %s10, %s8
  $region1: #{tpu_custom_call.1} parent=0
    #allocation2 [shape = 'u8[1024]{0}', space=vmem, size = 0x400, scoped, tag = 'output window, operand 0']
    #allocation3 [shape = 's32[2]{0}', space=sflag, size = 0x8, scoped, tag = 'scoped memory for tpu_custom_call.1']
    #allocation4 [shape = 'u8[1024]{0}', space=vmem, size = 0x400, scoped, tag = 'output window, operand 1']
    #allocation5 [shape = 's32[2]{0}', space=sflag, size = 0x8, scoped, tag = 'scoped memory for tpu_custom_call.1']
    %12 = vsyncpa [#allocation3], 0
    %s13 = scalar_lea.sflag [#allocation3], 1
    %14 = vsyncpa %s13, 0
    %15 = vsyncpa [#allocation5], 0
    %s16 = scalar_lea.sflag [#allocation5], 1
    %17 = vsyncpa %s16, 0
    loop: start=0, step=1, limit=6
    $region2: #{tpu_custom_call.1} parent=1 // loop_pre_header
      _
    $region3: #{tpu_custom_call.1} parent=1 // loop_header
      %s19 = sphi 0, %s23
      %p20 = scmp.ge.s32.totalorder %s19, 6
      %s26 = sphi 0, %s38
      %s27 = sphi 0, %s34
      %s28 = sphi 0, %s26
      %s29 = sphi 0, %s27
      %s30 = sphi 0, %s28
      %s31 = sphi 0, %s29
      %s43 = sphi 0, %s45
      %s46 = sphi 0, %s43
      %s47 = sphi 0, %s46
      %s63 = sphi 0, %s47
      %s67 = sphi 0, %s67
      %s69 = sphi 0, %s67
      %s70 = sphi 0, %s69
      %s84 = sphi 0, %s70
      %s88 = sphi 0, %s88
      %s90 = sphi 0, %s88
      %s91 = sphi 0, %s90
      %s105 = sphi 0, %s91
      %s109 = sphi 0, %s109
      %s111 = sphi 0, %s109
      %s112 = sphi 0, %s111
      %s126 = sphi 0, %s112
      %s130 = sphi 0, %s130
      %s132 = sphi 0, %s130
      %s133 = sphi 0, %s132
      %s147 = sphi 0, %s133
      %s153 = sphi 0, %s155
      %s156 = sphi 0, %s153
      %s157 = sphi 0, %s156
      %s173 = sphi 0, %s157
      %s179 = sphi 0, %s181
      %s182 = sphi 0, %s179
      %s183 = sphi 0, %s182
      %s199 = sphi 0, %s183
    $region4: #{tpu_custom_call.1} parent=1 // loop_header_branch
      %22 = sbr.rel (%p20) target = $region8
    $region5: #{tpu_custom_call.1} parent=1 // loop_body
      %s24 = ssub.s32 %s19, 1
      %s25 = ssub.s32 %s19, 2
      %s32 = sadd.s32 1, %s27
      %p33 = scmp.ge.s32.totalorder %s32, 2
      %s34 = scalar_select %p33, 0, %s32
      %s35 = sadd.s32 1, %s26
      %s36 = scalar_select %p33, %s35, %s26
      %p37 = scmp.ge.s32.totalorder %s36, 2
      %s38 = scalar_select %p37, 0, %s36
      %s39 = ssub.s32 %s26, %s38
      %s40 = ssub.s32 %s27, %s34
      %s41 = sor.u32 %s39, %s40
      %p42 = scmp.eq.s32.totalorder %s41, 0
      %s44 = sadd.s32 %s43, 1
      %s45 = scalar_select %p42, %s43, %s44
      %p48 = pneg %p42
      %p49 = scmp.eq.s32.totalorder %s19, 3
      %p50 = por %p48, %p49
      %p51 = scmp.ne.s32.totalorder %s43, %s46
      %p52 = scmp.eq.s32.totalorder %s19, 0
      %p53 = por %p51, %p52
      %p54 = scmp.ne.s32.totalorder %s43, %s46
      %p55 = scmp.eq.s32.totalorder %s24, 3
      %p56 = por %p54, %p55
      %p57 = scmp.ne.s32.totalorder %s46, %s47
      %p58 = scmp.eq.s32.totalorder %s24, 0
      %p59 = por %p57, %p58
      %p60 = scmp.ne.s32.totalorder %s46, %s47
      %p61 = scmp.eq.s32.totalorder %s25, 3
      %p62 = por %p60, %p61
      %p64 = scmp.ne.s32.totalorder %s47, %s63
      %p65 = scmp.eq.s32.totalorder %s25, 0
      %p66 = por %p64, %p65
      %s68 = sadd.s32 %s67, 1
      %p71 = scmp.eq.s32.totalorder %s19, 3
      %p72 = scmp.ne.s32.totalorder %s67, %s69
      %p73 = scmp.eq.s32.totalorder %s19, 0
      %p74 = por %p72, %p73
      %p75 = scmp.ne.s32.totalorder %s67, %s69
      %p76 = scmp.eq.s32.totalorder %s24, 3
      %p77 = por %p75, %p76
      %p78 = scmp.ne.s32.totalorder %s69, %s70
      %p79 = scmp.eq.s32.totalorder %s24, 0
      %p80 = por %p78, %p79
      %p81 = scmp.ne.s32.totalorder %s69, %s70
      %p82 = scmp.eq.s32.totalorder %s25, 3
      %p83 = por %p81, %p82
      %p85 = scmp.ne.s32.totalorder %s70, %s84
      %p86 = scmp.eq.s32.totalorder %s25, 0
      %p87 = por %p85, %p86
      %s89 = sadd.s32 %s88, 1
      %p92 = scmp.eq.s32.totalorder %s19, 3
      %p93 = scmp.ne.s32.totalorder %s88, %s90
      %p94 = scmp.eq.s32.totalorder %s19, 0
      %p95 = por %p93, %p94
      %p96 = scmp.ne.s32.totalorder %s88, %s90
      %p97 = scmp.eq.s32.totalorder %s24, 3
      %p98 = por %p96, %p97
      %p99 = scmp.ne.s32.totalorder %s90, %s91
      %p100 = scmp.eq.s32.totalorder %s24, 0
      %p101 = por %p99, %p100
      %p102 = scmp.ne.s32.totalorder %s90, %s91
      %p103 = scmp.eq.s32.totalorder %s25, 3
      %p104 = por %p102, %p103
      %p106 = scmp.ne.s32.totalorder %s91, %s105
      %p107 = scmp.eq.s32.totalorder %s25, 0
      %p108 = por %p106, %p107
      %s110 = sadd.s32 %s109, 1
      %p113 = scmp.eq.s32.totalorder %s19, 3
      %p114 = scmp.ne.s32.totalorder %s109, %s111
      %p115 = scmp.eq.s32.totalorder %s19, 0
      %p116 = por %p114, %p115
      %p117 = scmp.ne.s32.totalorder %s109, %s111
      %p118 = scmp.eq.s32.totalorder %s24, 3
      %p119 = por %p117, %p118
      %p120 = scmp.ne.s32.totalorder %s111, %s112
      %p121 = scmp.eq.s32.totalorder %s24, 0
      %p122 = por %p120, %p121
      %p123 = scmp.ne.s32.totalorder %s111, %s112
      %p124 = scmp.eq.s32.totalorder %s25, 3
      %p125 = por %p123, %p124
      %p127 = scmp.ne.s32.totalorder %s112, %s126
      %p128 = scmp.eq.s32.totalorder %s25, 0
      %p129 = por %p127, %p128
      %s131 = sadd.s32 %s130, 1
      %p134 = scmp.eq.s32.totalorder %s19, 3
      %p135 = scmp.ne.s32.totalorder %s130, %s132
      %p136 = scmp.eq.s32.totalorder %s19, 0
      %p137 = por %p135, %p136
      %p138 = scmp.ne.s32.totalorder %s130, %s132
      %p139 = scmp.eq.s32.totalorder %s24, 3
      %p140 = por %p138, %p139
      %p141 = scmp.ne.s32.totalorder %s132, %s133
      %p142 = scmp.eq.s32.totalorder %s24, 0
      %p143 = por %p141, %p142
      %p144 = scmp.ne.s32.totalorder %s132, %s133
      %p145 = scmp.eq.s32.totalorder %s25, 3
      %p146 = por %p144, %p145
      %p148 = scmp.ne.s32.totalorder %s133, %s147
      %p149 = scmp.eq.s32.totalorder %s25, 0
      %p150 = por %p148, %p149
      %s151 = ssub.s32 %s26, %s38
      %p152 = scmp.eq.s32.totalorder %s151, 0
      %s154 = sadd.s32 %s153, 1
      %s155 = scalar_select %p152, %s153, %s154
      %p158 = pneg %p152
      %p159 = scmp.eq.s32.totalorder %s19, 3
      %p160 = por %p158, %p159
      %p161 = scmp.ne.s32.totalorder %s153, %s156
      %p162 = scmp.eq.s32.totalorder %s19, 0
      %p163 = por %p161, %p162
      %p164 = scmp.ne.s32.totalorder %s153, %s156
      %p165 = scmp.eq.s32.totalorder %s24, 3
      %p166 = por %p164, %p165
      %p167 = scmp.ne.s32.totalorder %s156, %s157
      %p168 = scmp.eq.s32.totalorder %s24, 0
      %p169 = por %p167, %p168
      %p170 = scmp.ne.s32.totalorder %s156, %s157
      %p171 = scmp.eq.s32.totalorder %s25, 3
      %p172 = por %p170, %p171
      %p174 = scmp.ne.s32.totalorder %s157, %s173
      %p175 = scmp.eq.s32.totalorder %s25, 0
      %p176 = por %p174, %p175
      %s177 = ssub.s32 %s26, %s38
      %p178 = scmp.eq.s32.totalorder %s177, 0
      %s180 = sadd.s32 %s179, 1
      %s181 = scalar_select %p178, %s179, %s180
      %p184 = pneg %p178
      %p185 = scmp.eq.s32.totalorder %s19, 3
      %p186 = por %p184, %p185
      %p187 = scmp.ne.s32.totalorder %s179, %s182
      %p188 = scmp.eq.s32.totalorder %s19, 0
      %p189 = por %p187, %p188
      %p190 = scmp.ne.s32.totalorder %s179, %s182
      %p191 = scmp.eq.s32.totalorder %s24, 3
      %p192 = por %p190, %p191
      %p193 = scmp.ne.s32.totalorder %s182, %s183
      %p194 = scmp.eq.s32.totalorder %s24, 0
      %p195 = por %p193, %p194
      %p196 = scmp.ne.s32.totalorder %s182, %s183
      %p197 = scmp.eq.s32.totalorder %s25, 3
      %p198 = por %p196, %p197
      %p200 = scmp.ne.s32.totalorder %s183, %s199
      %p201 = scmp.eq.s32.totalorder %s25, 0
      %p202 = por %p200, %p201
      %p203 = scmp.le.s32.totalorder 1, %s19
      %p204 = scmp.lt.s32.totalorder %s19, 5
      %p205 = pnand %p203, %p204
      %p206 = pneg %p205
      // Predicated region
      $region9: #{tpu_custom_call.1} parent=5 // pred_check
        _
      $region10: #{tpu_custom_call.1} parent=5 // pred_check_branch
        %208 = sbr.rel (%p205) target = $region12
      $region11: #{tpu_custom_call.1} parent=5 // pred_region
        %s209 = ssub.s32 %s19, 1
        // Predicated region
        $region13: #{tpu_custom_call.1} parent=11 // pred_check
          %p210 = pneg %p80
        $region14: #{tpu_custom_call.1} parent=11 // pred_check_branch
          %212 = sbr.rel (%p210) target = $region16
        $region15: #{tpu_custom_call.1} parent=11 // pred_region
          _
        $region16: #{tpu_custom_call.1} parent=11 // pred_fallthru
          _
        // Predicated region
        $region17: #{tpu_custom_call.1} parent=11 // pred_check
          %p213 = pneg %p101
        $region18: #{tpu_custom_call.1} parent=11 // pred_check_branch
          %215 = sbr.rel (%p213) target = $region20
        $region19: #{tpu_custom_call.1} parent=11 // pred_region
          _
        $region20: #{tpu_custom_call.1} parent=11 // pred_fallthru
          _
        // Predicated region
        $region21: #{tpu_custom_call.1} parent=11 // pred_check
          %p216 = pneg %p122
        $region22: #{tpu_custom_call.1} parent=11 // pred_check_branch
          %218 = sbr.rel (%p216) target = $region24
        $region23: #{tpu_custom_call.1} parent=11 // pred_region
          _
        $region24: #{tpu_custom_call.1} parent=11 // pred_fallthru
          _
        // Predicated region
        $region25: #{tpu_custom_call.1} parent=11 // pred_check
          %p219 = pneg %p143
        $region26: #{tpu_custom_call.1} parent=11 // pred_check_branch
          %221 = sbr.rel (%p219) target = $region28
        $region27: #{tpu_custom_call.1} parent=11 // pred_region
          _
        $region28: #{tpu_custom_call.1} parent=11 // pred_fallthru
          _
      $region12: #{tpu_custom_call.1} parent=5 // pred_fallthru
        _
      %p222 = scmp.lt.s32.totalorder %s19, 4
      // Predicated region
      $region29: #{tpu_custom_call.1} parent=5 // pred_check
        %p223 = pneg %p222
      $region30: #{tpu_custom_call.1} parent=5 // pred_check_branch
        %225 = sbr.rel (%p223) target = $region32
      $region31: #{tpu_custom_call.1} parent=5 // pred_region
        // Predicated region
        $region33: #{tpu_custom_call.1} parent=31 // pred_check
          %p226 = pneg %p53
        $region34: #{tpu_custom_call.1} parent=31 // pred_check_branch
          %228 = sbr.rel (%p226) target = $region36
        $region35: #{tpu_custom_call.1} parent=31 // pred_region
          %s229 = smul.u32 16, %s27
          %p230 = scmp.lt.s32.totalorder %s26, 1
          %s231 = scalar_select %p230, %s26, 1
          %p232 = scmp.lt.s32.totalorder %s229, 31
          %s233 = scalar_select %p232, %s229, 31
          %s234 = smul.addr %s231, 32
          %s235 = sadd.s32 %s233, %s234
          %s236 = smul.addr %s235, 4
          %s237 = scalar_lea.vmem %s0, %s236
          %s238 = smul.u32 16, %s27
        $region36: #{tpu_custom_call.1} parent=31 // pred_fallthru
          _
      $region32: #{tpu_custom_call.1} parent=5 // pred_fallthru
        _
      %p239 = scmp.le.s32.totalorder 1, %s19
      %p240 = scmp.lt.s32.totalorder %s19, 5
      %p241 = pnand %p239, %p240
      %p242 = pneg %p241
      // Predicated region
      $region37: #{tpu_custom_call.1} parent=5 // pred_check
        _
      $region38: #{tpu_custom_call.1} parent=5 // pred_check_branch
        %244 = sbr.rel (%p241) target = $region40
      $region39: #{tpu_custom_call.1} parent=5 // pred_region
        %s245 = ssub.s32 %s19, 1
        %s246 = smul.u32 16, %s29
        %p247 = scmp.lt.s32.totalorder %s28, 1
        %s248 = scalar_select %p247, %s28, 1
        %p249 = scmp.lt.s32.totalorder %s246, 31
        %s250 = scalar_select %p249, %s246, 31
        %s251 = smul.addr %s248, 32
        %s252 = sadd.s32 %s250, %s251
        %s253 = smul.addr %s252, 4
        %s254 = scalar_lea.vmem %s0, %s253
        %p255 = pneg %p59
        %p256 = pneg %p56
        %p257 = pneg %p80
        %p258 = pneg %p77
        %p259 = pneg %p101
        %p260 = pneg %p98
        %p261 = pneg %p122
        %p262 = pneg %p119
        %p263 = pneg %p143
        %p264 = pneg %p140
        %p265 = pneg %p169
        %p266 = pneg %p166
        %s267 = sand.u32 %s156, 1
        %s268 = scalar_lea.sflag [#allocation3], %s267
        %s269 = sand.u32 %s156, 1
        %s270 = scalar_lea.vmem [#allocation2], %s269
        %p271 = pneg %p195
        %p272 = pneg %p192
        %s273 = sand.u32 %s182, 1
        %s274 = scalar_lea.sflag [#allocation5], %s273
        %s275 = sand.u32 %s182, 1
        %s276 = scalar_lea.vmem [#allocation4], %s275
        %s277 = smul.u32 16, %s29
        %p278 = scmp.lt.s32.totalorder %s28, 1
        %s279 = scalar_select %p278, %s28, 1
        %p280 = scmp.lt.s32.totalorder %s277, 31
        %s281 = scalar_select %p280, %s277, 31
        %s282 = smul.addr %s279, 32
        %s283 = sadd.s32 %s281, %s282
        %s284 = smul.addr %s283, 4
        %s285 = scalar_lea.vmem %s0, %s284
        %s286 = smul.u32 16, %s29
        %p288 = scmp.eq.s32.totalorder %s29, 0
        // Predicated region
        $region41: #{tpu_custom_call.1} parent=39 // pred_check
          %p289 = pneg %p288
        $region42: #{tpu_custom_call.1} parent=39 // pred_check_branch
          %291 = sbr.rel (%p289) target = $region44
        $region43: #{tpu_custom_call.1} parent=39 // pred_region
          %292 = vst [vmem:[%s276] sm:$0x1] 0.0
          %293 = vst [vmem:[%s270] sm:$0x1] 0.0
        $region44: #{tpu_custom_call.1} parent=39 // pred_fallthru
          _
        %v294 = vld [vmem:[%s285] sm:$0xf]
        %v295 = vld [vmem:[%s285 + $0x4] sm:$0xf]
        %v296 = vld [vmem:[%s285 + $0x8] sm:$0xf]
        %v297 = vld [vmem:[%s285 + $0xc] sm:$0xf]
        %v298 = vld [vmem:[%s285 + $0x10] sm:$0xf]
        %v299 = vld [vmem:[%s285 + $0x14] sm:$0xf]
        %v300 = vld [vmem:[%s285 + $0x18] sm:$0xf]
        %v301 = vld [vmem:[%s285 + $0x1c] sm:$0xf]
        %v302 = vld [vmem:[%s285 + $0x20] sm:$0xf]
        %v303 = vld [vmem:[%s285 + $0x24] sm:$0xf]
        %v304 = vld [vmem:[%s285 + $0x28] sm:$0xf]
        %v305 = vld [vmem:[%s285 + $0x2c] sm:$0xf]
        %v306 = vld [vmem:[%s285 + $0x30] sm:$0xf]
        %v307 = vld [vmem:[%s285 + $0x34] sm:$0xf]
        %v308 = vld [vmem:[%s285 + $0x38] sm:$0xf]
        %v309 = vld [vmem:[%s285 + $0x3c] sm:$0xf]
        %v310 = vld [vmem:[%s1] sm:$0xf]
        %v311 = vld [vmem:[%s1 + $0x4] sm:$0xf]
        %v312 = vld [vmem:[%s1 + $0x8] sm:$0xf]
        %v313 = vld [vmem:[%s1 + $0xc] sm:$0xf]
        %v314 = vld [vmem:[%s1 + $0x10] sm:$0xf]
        %v315 = vld [vmem:[%s1 + $0x14] sm:$0xf]
        %v316 = vld [vmem:[%s2] sm:$0x1]
        %v318 = vlaneseq
        %v319 = vshrl.u32 %v318, 7
        %v320 = vsub.s32 0, %v319
        %v321 = vrot.slane %v316, %v320
        %v339 = vunpack.c.l.b16 %v294
        %v340 = vunpack.c.l.b16 %v295
        %v341 = vunpack.c.l.b16 %v296
        %v342 = vunpack.c.l.b16 %v297
        %v343 = vunpack.c.l.b16 %v298
        %v344 = vunpack.c.l.b16 %v299
        %v345 = vunpack.c.l.b16 %v300
        %v346 = vunpack.c.l.b16 %v301
        %v347 = vunpack.c.l.b16 %v302
        %v348 = vunpack.c.l.b16 %v303
        %v349 = vunpack.c.l.b16 %v304
        %v350 = vunpack.c.l.b16 %v305
        %v351 = vunpack.c.l.b16 %v306
        %v352 = vunpack.c.l.b16 %v307
        %v353 = vunpack.c.l.b16 %v308
        %v354 = vunpack.c.l.b16 %v309
        %v355 = vpack.c.b16 %v340, %v339
        %v356 = vpack.c.b16 %v342, %v341
        %v357 = vpack.c.b16 %v344, %v343
        %v358 = vpack.c.b16 %v346, %v345
        %v359 = vpack.c.b16 %v348, %v347
        %v360 = vpack.c.b16 %v350, %v349
        %v361 = vpack.c.b16 %v352, %v351
        %v362 = vpack.c.b16 %v354, %v353
        %v369 = vunpack.c.l.b16 %v310
        %v370 = vunpack.c.l.b16 %v311
        %v371 = vunpack.c.l.b16 %v312
        %v372 = vunpack.c.l.b16 %v313
        %v373 = vunpack.c.l.b16 %v314
        %v374 = vunpack.c.l.b16 %v315
        %v375 = vpack.c.b16 %v370, %v369
        %v376 = vpack.c.b16 %v372, %v371
        %v377 = vpack.c.b16 %v374, %v373
        %vm381 = vcmask 392192
        %v383 = vsel %vm381, %v355, 0
        %v386 = vsel %vm381, %v356, 0
        %v389 = vsel %vm381, %v357, 0
        %v392 = vsel %vm381, %v358, 0
        %v395 = vsel %vm381, %v359, 0
        %v398 = vsel %vm381, %v360, 0
        %v401 = vsel %vm381, %v361, 0
        %v404 = vsel %vm381, %v362, 0
        %406 = vmatprep.subr.bf16.mxu0 0
        %407 = vmatpush1.bf16.msra.mxu0 0
        %408 = vmatprep.subr.bf16.mxu0 0
        %409 = vmatpush1.bf16.msra.mxu0 0
        %410 = vmatprep.subr.bf16.mxu0 0
        %411 = vmatpush1.bf16.msra.mxu0 0
        %412 = vmatprep.subr.bf16.mxu0 0
        %413 = vmatpush1.bf16.msra.mxu0 0
        %414 = vmatprep.subr.bf16.mxu0 0
        %415 = vmatpush1.bf16.msra.mxu0 0
        %416 = vmatprep.subr.bf16.mxu0 0
        %417 = vmatpush1.bf16.msra.mxu0 %v377
        %418 = vmatprep.subr.bf16.mxu0 0
        %419 = vmatpush1.bf16.msra.mxu0 %v376
        %420 = vmatprep.subr.bf16.mxu0 0
        %421 = vmatpush1.bf16.msra.mxu0 %v375
        %422 = vmatprep.subr.bf16.mxu0 0
        %423 = vmatpush2.bf16.msra.mxu0 0
        %424 = vmatprep.subr.bf16.mxu0 0
        %425 = vmatpush2.bf16.msra.mxu0 0
        %426 = vmatprep.subr.bf16.mxu0 0
        %427 = vmatpush2.bf16.msra.mxu0 0
        %428 = vmatprep.subr.bf16.mxu0 0
        %429 = vmatpush2.bf16.msra.mxu0 0
        %430 = vmatprep.subr.bf16.mxu0 0
        %431 = vmatpush2.bf16.msra.mxu0 0
        %432 = vmatprep.subr.bf16.mxu0 0
        %433 = vmatpush2.bf16.msra.mxu0 0
        %434 = vmatprep.subr.bf16.mxu0 0
        %435 = vmatpush2.bf16.msra.mxu0 0
        %436 = vmatprep.subr.bf16.mxu0 0
        %437 = vmatpush2.bf16.msra.mxu0 0
        %438 = vmatprep.mubr.bf16.mxu0 0
        %439 = vmatmul.mubr.bf16.gmra.mxu0 %v383
        %v440 = vpop.f32.mrf.mxu0
        %v441 = vadd.f32 %v321, %v440
        %v442 = vpop.f32.mrf.mxu0
        %v443 = vpop.f32.mrf.mxu0
        %v444 = vadd.f32 %v321, %v443
        %v445 = vpop.f32.mrf.mxu0
        %446 = vmatprep.mubr.bf16.mxu0 0
        %447 = vmatmul.mubr.bf16.gmra.mxu0 %v386
        %v448 = vpop.f32.mrf.mxu0
        %v449 = vadd.f32 %v321, %v448
        %v450 = vpop.f32.mrf.mxu0
        %v451 = vpop.f32.mrf.mxu0
        %v452 = vadd.f32 %v321, %v451
        %v453 = vpop.f32.mrf.mxu0
        %454 = vmatprep.mubr.bf16.mxu0 0
        %455 = vmatmul.mubr.bf16.gmra.mxu0 %v389
        %v456 = vpop.f32.mrf.mxu0
        %v457 = vadd.f32 %v321, %v456
        %v458 = vpop.f32.mrf.mxu0
        %v459 = vpop.f32.mrf.mxu0
        %v460 = vadd.f32 %v321, %v459
        %v461 = vpop.f32.mrf.mxu0
        %462 = vmatprep.mubr.bf16.mxu0 0
        %463 = vmatmul.mubr.bf16.gmra.mxu0 %v392
        %v464 = vpop.f32.mrf.mxu0
        %v465 = vadd.f32 %v321, %v464
        %v466 = vpop.f32.mrf.mxu0
        %v467 = vpop.f32.mrf.mxu0
        %v468 = vadd.f32 %v321, %v467
        %v469 = vpop.f32.mrf.mxu0
        %470 = vmatprep.mubr.bf16.mxu0 0
        %471 = vmatmul.mubr.bf16.gmra.mxu0 %v395
        %v472 = vpop.f32.mrf.mxu0
        %v473 = vadd.f32 %v321, %v472
        %v474 = vpop.f32.mrf.mxu0
        %v475 = vpop.f32.mrf.mxu0
        %v476 = vadd.f32 %v321, %v475
        %v477 = vpop.f32.mrf.mxu0
        %478 = vmatprep.mubr.bf16.mxu0 0
        %479 = vmatmul.mubr.bf16.gmra.mxu0 %v398
        %v480 = vpop.f32.mrf.mxu0
        %v481 = vadd.f32 %v321, %v480
        %v482 = vpop.f32.mrf.mxu0
        %v483 = vpop.f32.mrf.mxu0
        %v484 = vadd.f32 %v321, %v483
        %v485 = vpop.f32.mrf.mxu0
        %486 = vmatprep.mubr.bf16.mxu0 0
        %487 = vmatmul.mubr.bf16.gmra.mxu0 %v401
        %v488 = vpop.f32.mrf.mxu0
        %v489 = vadd.f32 %v321, %v488
        %v490 = vpop.f32.mrf.mxu0
        %v491 = vpop.f32.mrf.mxu0
        %v492 = vadd.f32 %v321, %v491
        %v493 = vpop.f32.mrf.mxu0
        %494 = vmatprep.mubr.bf16.mxu0 0
        %495 = vmatmul.mubr.bf16.gmra.mxu0 %v404
        %v496 = vpop.f32.mrf.mxu0
        %v497 = vadd.f32 %v321, %v496
        %v498 = vpop.f32.mrf.mxu0
        %v499 = vpop.f32.mrf.mxu0
        %v500 = vadd.f32 %v321, %v499
        %v501 = vpop.f32.mrf.mxu0
        %502 = vdwg.mxu0
        %v503 = vmax.f32 %v441, 0.0
        %v504 = vmax.f32 %v444, 0.0
        %v505 = vmax.f32 %v449, 0.0
        %v506 = vmax.f32 %v452, 0.0
        %v507 = vmax.f32 %v457, 0.0
        %v508 = vmax.f32 %v460, 0.0
        %v509 = vmax.f32 %v465, 0.0
        %v510 = vmax.f32 %v468, 0.0
        %v511 = vmax.f32 %v473, 0.0
        %v512 = vmax.f32 %v476, 0.0
        %v513 = vmax.f32 %v481, 0.0
        %v514 = vmax.f32 %v484, 0.0
        %v515 = vmax.f32 %v489, 0.0
        %v516 = vmax.f32 %v492, 0.0
        %v517 = vmax.f32 %v497, 0.0
        %v518 = vmax.f32 %v500, 0.0
        %v519 = vld [vmem:[%s276] sm:$0x1]
        %v520 = vadd.f32 %v503, %v504
        %v521 = vadd.f32 %v520, %v505
        %v522 = vadd.f32 %v521, %v506
        %v523 = vadd.f32 %v522, %v507
        %v524 = vadd.f32 %v523, %v508
        %v525 = vadd.f32 %v524, %v509
        %v526 = vadd.f32 %v525, %v510
        %v527 = vadd.f32 %v526, %v511
        %v528 = vadd.f32 %v527, %v512
        %v529 = vadd.f32 %v528, %v513
        %v530 = vadd.f32 %v529, %v514
        %v531 = vadd.f32 %v530, %v515
        %v532 = vadd.f32 %v531, %v516
        %v533 = vadd.f32 %v532, %v517
        %v534 = vadd.f32 %v533, %v518
        %v535 = vrot.slane %v534, 4
        %v536 = vadd.f32 %v534, %v535
        %v537 = vrot.slane %v536, 2
        %v538 = vadd.f32 %v536, %v537
        %v539 = vrot.slane %v538, 1
        %v540 = vadd.f32 %v538, %v539
        %v541 = vadd.f32 %v519, %v540
        %542 = vst [vmem:[%s276] sm:$0x1] %v541
        %p543 = scmp.eq.s32.totalorder %s29, 1
        // Predicated region
        $region45: #{tpu_custom_call.1} parent=39 // pred_check
          %p544 = pneg %p543
        $region46: #{tpu_custom_call.1} parent=39 // pred_check_branch
          %546 = sbr.rel (%p544) target = $region48
        $region47: #{tpu_custom_call.1} parent=39 // pred_region
          %v547 = vld [vmem:[%s276] sm:$0x1]
          %v548 = vmul.f32 %v547, 0.00390625
          %549 = vst [vmem:[%s276] sm:$0x1] %v548
          %v550 = vld [vmem:[%s3] sm:$0xff]
          %v551 = vld [vmem:[%s3 + $0x8] sm:$0xff]
          %v552 = vld [vmem:[%s3 + $0x10] sm:$0xff]
          %v553 = vld [vmem:[%s3 + $0x18] sm:$0xff]
          %v554 = vld [vmem:[%s3 + $0x20] sm:$0xff]
          %v555 = vld [vmem:[%s3 + $0x28] sm:$0xff]
          %v556 = vld [vmem:[%s3 + $0x30] sm:$0xff]
          %v557 = vld [vmem:[%s3 + $0x38] sm:$0xff]
          %v558 = vld [vmem:[%s3 + $0x40] sm:$0xff]
          %v559 = vld [vmem:[%s3 + $0x48] sm:$0xff]
          %v560 = vld [vmem:[%s3 + $0x50] sm:$0xff]
          %v561 = vld [vmem:[%s3 + $0x58] sm:$0xff]
          %v562 = vld [vmem:[%s3 + $0x60] sm:$0xff]
          %v563 = vld [vmem:[%s3 + $0x68] sm:$0xff]
          %v564 = vld [vmem:[%s3 + $0x70] sm:$0xff]
          %v565 = vld [vmem:[%s3 + $0x78] sm:$0xff]
          %v566 = vld [vmem:[%s4] sm:$0x1]
          %567 = vmatprep.subr.mxu0 0.0
          %568 = vmatpush1.msra.mxu0 %v565
          %569 = vmatprep.subr.mxu0 0.0
          %570 = vmatpush1.msra.mxu0 %v564
          %571 = vmatprep.subr.mxu0 0.0
          %572 = vmatpush1.msra.mxu0 %v563
          %573 = vmatprep.subr.mxu0 0.0
          %574 = vmatpush1.msra.mxu0 %v562
          %575 = vmatprep.subr.mxu0 0.0
          %576 = vmatpush1.msra.mxu0 %v561
          %577 = vmatprep.subr.mxu0 0.0
          %578 = vmatpush1.msra.mxu0 %v560
          %579 = vmatprep.subr.mxu0 0.0
          %580 = vmatpush1.msra.mxu0 %v559
          %581 = vmatprep.subr.mxu0 0.0
          %582 = vmatpush1.msra.mxu0 %v558
          %583 = vmatprep.subr.mxu0 0.0
          %584 = vmatpush1.msra.mxu0 %v557
          %585 = vmatprep.subr.mxu0 0.0
          %586 = vmatpush1.msra.mxu0 %v556
          %587 = vmatprep.subr.mxu0 0.0
          %588 = vmatpush1.msra.mxu0 %v555
          %589 = vmatprep.subr.mxu0 0.0
          %590 = vmatpush1.msra.mxu0 %v554
          %591 = vmatprep.subr.mxu0 0.0
          %592 = vmatpush1.msra.mxu0 %v553
          %593 = vmatprep.subr.mxu0 0.0
          %594 = vmatpush1.msra.mxu0 %v552
          %595 = vmatprep.subr.mxu0 0.0
          %596 = vmatpush1.msra.mxu0 %v551
          %597 = vmatprep.subr.mxu0 0.0
          %598 = vmatpush1.msra.mxu0 %v550
          %599 = vmatprep.subr.mxu0 0.0
          %600 = vmatpush2.msra.mxu0 0.0
          %601 = vmatprep.subr.mxu0 0.0
          %602 = vmatpush2.msra.mxu0 0.0
          %603 = vmatprep.subr.mxu0 0.0
          %604 = vmatpush2.msra.mxu0 0.0
          %605 = vmatprep.subr.mxu0 0.0
          %606 = vmatpush2.msra.mxu0 0.0
          %607 = vmatprep.subr.mxu0 0.0
          %608 = vmatpush2.msra.mxu0 0.0
          %609 = vmatprep.subr.mxu0 0.0
          %610 = vmatpush2.msra.mxu0 0.0
          %611 = vmatprep.subr.mxu0 0.0
          %612 = vmatpush2.msra.mxu0 0.0
          %613 = vmatprep.subr.mxu0 0.0
          %614 = vmatpush2.msra.mxu0 0.0
          %615 = vmatprep.subr.mxu0 0.0
          %616 = vmatpush2.msra.mxu0 0.0
          %617 = vmatprep.subr.mxu0 0.0
          %618 = vmatpush2.msra.mxu0 0.0
          %619 = vmatprep.subr.mxu0 0.0
          %620 = vmatpush2.msra.mxu0 0.0
          %621 = vmatprep.subr.mxu0 0.0
          %622 = vmatpush2.msra.mxu0 0.0
          %623 = vmatprep.subr.mxu0 0.0
          %624 = vmatpush2.msra.mxu0 0.0
          %625 = vmatprep.subr.mxu0 0.0
          %626 = vmatpush2.msra.mxu0 0.0
          %627 = vmatprep.subr.mxu0 0.0
          %628 = vmatpush2.msra.mxu0 0.0
          %629 = vmatprep.subr.mxu0 0.0
          %630 = vmatpush2.msra.mxu0 0.0
          %631 = vmatprep.mubr.f32.mxu0 0.0
          %632 = vmatmul.mubr.f32.gmra.mxu0 %v548
          %v633 = vpop.f32.mrf.mxu0
          %v634 = vadd.f32 %v566, %v633
          %v635 = vpop.f32.mrf.mxu0
          %636 = vdwg.mxu0
          %637 = vst [vmem:[%s270] sm:$0x1] %v634
        $region48: #{tpu_custom_call.1} parent=39 // pred_fallthru
          _
        %s638 = sand.u32 %s156, 1
        %s639 = scalar_lea.sflag [#allocation3], %s638
        %s640 = sand.u32 %s156, 1
        %s641 = scalar_lea.vmem [#allocation2], %s640
        %s642 = sand.u32 %s182, 1
        %s643 = scalar_lea.sflag [#allocation5], %s642
        %s644 = sand.u32 %s182, 1
        %s645 = scalar_lea.vmem [#allocation4], %s644
        // Predicated region
        $region49: #{tpu_custom_call.1} parent=39 // pred_check
          %p646 = pneg %p166
        $region50: #{tpu_custom_call.1} parent=39 // pred_check_branch
          %648 = sbr.rel (%p646) target = $region52
        $region51: #{tpu_custom_call.1} parent=39 // pred_region
          %s650 = ssub.s32 16, 16
          %651 = vsyncadd %s639, %s650
          %s652 = smul.addr %s28, 16
          %s653 = scalar_lea.hbm %s5, %s652
          %s655 = sshll.u32 %s641, 4
          %s656 = int_to_ptr.vmem [resolvable:$true] %s655
          %658 = dma.vmem_to_hbm [thread:$0]  %s656, 16, %s653, %s639
        $region52: #{tpu_custom_call.1} parent=39 // pred_fallthru
          _
        // Predicated region
        $region53: #{tpu_custom_call.1} parent=39 // pred_check
          %p659 = pneg %p192
        $region54: #{tpu_custom_call.1} parent=39 // pred_check_branch
          %661 = sbr.rel (%p659) target = $region56
        $region55: #{tpu_custom_call.1} parent=39 // pred_region
          %s663 = ssub.s32 16, 16
          %664 = vsyncadd %s643, %s663
          %s665 = smul.addr %s28, 16
          %s666 = scalar_lea.hbm %s6, %s665
          %s668 = sshll.u32 %s645, 4
          %s669 = int_to_ptr.vmem [resolvable:$true] %s668
          %671 = dma.vmem_to_hbm [thread:$0]  %s669, 16, %s666, %s643
        $region56: #{tpu_custom_call.1} parent=39 // pred_fallthru
          _
      $region40: #{tpu_custom_call.1} parent=5 // pred_fallthru
        _
      %p672 = scmp.le.s32.totalorder 2, %s19
      // Predicated region
      $region57: #{tpu_custom_call.1} parent=5 // pred_check
        %p673 = pneg %p672
      $region58: #{tpu_custom_call.1} parent=5 // pred_check_branch
        %675 = sbr.rel (%p673) target = $region60
      $region59: #{tpu_custom_call.1} parent=5 // pred_region
        %s676 = ssub.s32 %s19, 2
        // Predicated region
        $region61: #{tpu_custom_call.1} parent=59 // pred_check
          %p677 = pneg %p172
        $region62: #{tpu_custom_call.1} parent=59 // pred_check_branch
          %679 = sbr.rel (%p677) target = $region64
        $region63: #{tpu_custom_call.1} parent=59 // pred_region
          %s680 = sand.u32 %s157, 1
          %s681 = scalar_lea.sflag [#allocation3], %s680
          %s682 = sand.u32 %s157, 1
          %s683 = scalar_lea.vmem [#allocation2], %s682
          %684 = dma.done %s681, 16
        $region64: #{tpu_custom_call.1} parent=59 // pred_fallthru
          _
        // Predicated region
        $region65: #{tpu_custom_call.1} parent=59 // pred_check
          %p685 = pneg %p198
        $region66: #{tpu_custom_call.1} parent=59 // pred_check_branch
          %687 = sbr.rel (%p685) target = $region68
        $region67: #{tpu_custom_call.1} parent=59 // pred_region
          %s688 = sand.u32 %s183, 1
          %s689 = scalar_lea.sflag [#allocation5], %s688
          %s690 = sand.u32 %s183, 1
          %s691 = scalar_lea.vmem [#allocation4], %s690
          %692 = dma.done %s689, 16
        $region68: #{tpu_custom_call.1} parent=59 // pred_fallthru
          _
      $region60: #{tpu_custom_call.1} parent=5 // pred_fallthru
        _
    $region6: #{tpu_custom_call.1} parent=1 // loop_footer
      %s23 = sadd.s32 1, %s19
    $region7: #{tpu_custom_call.1} parent=1 // loop_footer_branch
      %18 = sbr.rel target = $region3
    $region8: #{tpu_custom_call.1} parent=1 // loop_exit
      _
    %693 = vsyncpa [#allocation3], 1
    %s694 = scalar_lea.sflag [#allocation3], 1
    %695 = vsyncpa %s694, 1
    %696 = vsyncpa [#allocation5], 1
    %s697 = scalar_lea.sflag [#allocation5], 1
    %698 = vsyncpa %s697, 1

</llo_original>
